<compile_context>
chip_gen: v7x
topology: tpu7x:2x2x1
jax: 0.10.0
libtpu: 0.0.40
codegen_flags: <defaults>
</compile_context>

<pallas_src>
import jax
import jax.numpy as jnp
from jax.experimental import pallas as pl

# Small, module-consistent shapes
B = 2    # batch
N = 8    # num objects (image regions)
H = 32   # HIDDEN_SIZE
V = 64   # IMG_FEAT_SIZE


def _elu(x):
    # ELU(alpha=1).  Clamp the exp argument so large positive x never produces
    # an inf that the select would have to discard; exp runs on the EUP slot.
    return jnp.where(x > 0, x, jnp.exp(jnp.minimum(x, 0.0)) - 1.0)


def topdown_kernel(q_ref, v_ref,
                   wnv_ref, wnq_ref, bn_ref,   # fused nonlinear layer (V->H, H->H, bias)
                   wl_ref, bl_ref,             # attention logits (row vector + scalar bias)
                   wqn_ref, bqn_ref,           # q_net  (H -> H)
                   wvn_ref, bvn_ref,           # v_net  (V -> H)
                   out_ref):
    Bq = q_ref.shape[0]
    Nobj = v_ref.shape[0] // Bq

    q = q_ref[...]                         # (B, H)
    v = v_ref[...]                         # (B*N, V)  ORIGINAL image features

    # ---- fused AttnMap projections + nonlinear layer (2 matmuls total) ----
    pre_v = jnp.dot(v, wnv_ref[...], preferred_element_type=jnp.float32) + bn_ref[...]   # (B*N, H)
    pre_q = jnp.dot(q, wnq_ref[...], preferred_element_type=jnp.float32)                 # (B, H)

    wl = wl_ref[...]                       # (1, H)
    bl = bl_ref[...]                       # (1, 1)

    # ---- per-batch softmax over objects + attention-weighted sum of v ----
    # B is tiny (2): unroll in Python; slices start at multiples of N=8 rows,
    # i.e. exactly at sublane-tile boundaries.
    atted_rows = []
    for b in range(Bq):
        lo = b * Nobj
        joint = _elu(pre_v[lo:lo + Nobj, :] + pre_q[b:b + 1, :])           # (N, H)
        # logits via VPU mul + XLU lane reduce (avoids a 1-wide MXU matmul)
        logits = jnp.sum(joint * wl, axis=-1, keepdims=True) + bl          # (N, 1)
        m = jnp.max(logits, axis=0, keepdims=True)                         # (1, 1)
        e = jnp.exp(logits - m)                                            # (N, 1)
        s = jnp.sum(e, axis=0, keepdims=True)                              # (1, 1)
        att = e * pl.reciprocal(s, approx=True)                            # (N, 1)
        vb = v[lo:lo + Nobj, :]                                            # (N, V)
        atted_rows.append(jnp.sum(att * vb, axis=0, keepdims=True))        # (1, V)
    atted_v = atted_rows[0] if Bq == 1 else jnp.concatenate(atted_rows, axis=0)  # (B, V)

    # ---- q_net / v_net MLPs + joint representation ----
    qr = jnp.dot(q, wqn_ref[...], preferred_element_type=jnp.float32) + bqn_ref[...]        # (B, H)
    vr = jnp.dot(atted_v, wvn_ref[...], preferred_element_type=jnp.float32) + bvn_ref[...]  # (B, H)
    out_ref[...] = (_elu(qr) * _elu(vr)).astype(out_ref.dtype)


def topdown_attention(q, v, params):
    """q: (B, H), v: (B, N, V); params: effective (in, out)-layout weights."""
    Bq, Hh = q.shape
    _, Nobj, Vv = v.shape
    v_flat = v.reshape(Bq * Nobj, Vv)      # layout-identical flatten (free at XLA level)

    # grid=() : single invocation; every operand is a whole-array VMEM block,
    # weights are DMA'd exactly once, output is a single (B, H) store.
    return pl.pallas_call(
        topdown_kernel,
        out_shape=jax.ShapeDtypeStruct((Bq, Hh), jnp.float32),
    )(q, v_flat,
      params["Wnv_eff"], params["Wnq_eff"], params["bn_eff"],
      params["Wl_row"], params["bl"],
      params["Wqn_t"], params["bqn"],
      params["Wvn_t"], params["bvn"])


# ---------------- parameter construction (deterministic, synthetic) ----------------
def _wn_linear(key, out_dim, in_dim):
    """weight_norm(nn.Linear(in, out), dim=None): eff_W = g * W / ||W||_F (scalar g)."""
    kw, kb, kg = jax.random.split(key, 3)
    W = jax.random.normal(kw, (out_dim, in_dim), jnp.float32) * 0.1
    b = jax.random.normal(kb, (out_dim,), jnp.float32) * 0.1
    g = jax.random.uniform(kg, (), jnp.float32, minval=0.5, maxval=1.5)
    W_eff = g * W / jnp.linalg.norm(W)
    return W_eff, b


def make_params(key):
    ks = jax.random.split(key, 6)
    Wq, bq = _wn_linear(ks[0], H, H)          # AttnMap.linear_q
    Wv, bv = _wn_linear(ks[1], V, V)          # AttnMap.linear_v
    Wn, bn = _wn_linear(ks[2], H, V + H)      # AttnMap.nonlinear (single-layer MLP)
    Wl, bl = _wn_linear(ks[3], 1, H)          # AttnMap.linear
    Wqn, bqn = _wn_linear(ks[4], H, H)        # q_net
    Wvn, bvn = _wn_linear(ks[5], H, V)        # v_net

    # PyTorch-style [out, in] weights kept for the reference.
    torch_like = dict(Wq=Wq, bq=bq, Wv=Wv, bv=bv, Wn=Wn, bn=bn,
                      Wl=Wl, bl=bl, Wqn=Wqn, bqn=bqn, Wvn=Wvn, bvn=bvn)

    # Kernel params: [in, out] layout, with linear_v / linear_q algebraically
    # folded into the nonlinear layer (no activation between them):
    #   (v @ Wv^T + bv) @ WnT_v + (q @ Wq^T + bq) @ WnT_q + bn
    #     = v @ (Wv^T WnT_v) + q @ (Wq^T WnT_q) + (bv @ WnT_v + bq @ WnT_q + bn)
    WnT = Wn.T                                # (V+H, H); concat order in forward is (v, q)
    Wnv_t, Wnq_t = WnT[:V], WnT[V:]
    kernel_params = dict(
        Wnv_eff=Wv.T @ Wnv_t,                                   # (V, H)
        Wnq_eff=Wq.T @ Wnq_t,                                   # (H, H)
        bn_eff=(bn + bv @ Wnv_t + bq @ Wnq_t).reshape(1, H),    # (1, H)
        Wl_row=Wl.reshape(1, H), bl=bl.reshape(1, 1),
        Wqn_t=Wqn.T, bqn=bqn.reshape(1, H),
        Wvn_t=Wvn.T, bvn=bvn.reshape(1, H),
    )
    return torch_like, kernel_params


def ref_forward(q, v, P):
    """Pure-JAX reference matching the PyTorch forward (eval mode)."""
    elu = jax.nn.elu
    v_p = v @ P["Wv"].T + P["bv"]                                   # (B, N, V)
    q_p = q @ P["Wq"].T + P["bq"]                                   # (B, H)
    q_rep = jnp.broadcast_to(q_p[:, None, :],
                             (v.shape[0], v.shape[1], q_p.shape[1]))
    vq = jnp.concatenate([v_p, q_rep], axis=2)                      # (B, N, V+H)
    joint = elu(vq @ P["Wn"].T + P["bn"])                           # (B, N, H)
    logits = joint @ P["Wl"].T + P["bl"]                            # (B, N, 1)
    w = jax.nn.softmax(logits, axis=1)
    atted_v = (w * v).sum(1)                                        # (B, V)
    q_repr = elu(q @ P["Wqn"].T + P["bqn"])                         # (B, H)
    v_repr = elu(atted_v @ P["Wvn"].T + P["bvn"])                   # (B, H)
    return q_repr * v_repr


if __name__ == "__main__":
    key = jax.random.PRNGKey(0)
    kp, kq, kv = jax.random.split(key, 3)

    torch_like, kernel_params = make_params(kp)
    q = jax.random.normal(kq, (B, H), jnp.float32)
    v = jax.random.normal(kv, (B, N, V), jnp.float32)

    out = topdown_attention(q, v, kernel_params)
    out = jax.block_until_ready(out)

    ref = ref_forward(q, v, torch_like)
    assert out.shape == (B, H)
    # Tolerance covers the EUP approx-reciprocal used for softmax normalization
    # and the clamped exp(x)-1 ELU form (vs. expm1 in the reference).
    assert jnp.allclose(out, ref, rtol=2e-3, atol=2e-3), (out, ref)

    print("KERNEL_OK")
</pallas_src>

<mosaic_0001>
module attributes {stable_mosaic.version = 11 : i64} {
  func.func @topdown_kernel(%arg0: memref<2x32xf32, #tpu.memory_space<vmem>>, %arg1: memref<16x64xf32, #tpu.memory_space<vmem>>, %arg2: memref<64x32xf32, #tpu.memory_space<vmem>>, %arg3: memref<32x32xf32, #tpu.memory_space<vmem>>, %arg4: memref<1x32xf32, #tpu.memory_space<vmem>>, %arg5: memref<1x32xf32, #tpu.memory_space<vmem>>, %arg6: memref<1x1xf32, #tpu.memory_space<vmem>>, %arg7: memref<32x32xf32, #tpu.memory_space<vmem>>, %arg8: memref<1x32xf32, #tpu.memory_space<vmem>>, %arg9: memref<64x32xf32, #tpu.memory_space<vmem>>, %arg10: memref<1x32xf32, #tpu.memory_space<vmem>>, %arg11: memref<2x32xf32, #tpu.memory_space<vmem>>) attributes {dimension_semantics = [], scalar_prefetch = 0 : i64, scratch_operands = 0 : i64, tpu.core_type = #tpu.core_type<tc>} {
    %c0 = arith.constant 0 : index
    %c0_0 = arith.constant 0 : index
    %0 = vector.load %arg0[%c0, %c0_0] : memref<2x32xf32, #tpu.memory_space<vmem>>, vector<2x32xf32>
    %c0_1 = arith.constant 0 : index
    %c0_2 = arith.constant 0 : index
    %1 = vector.load %arg1[%c0_1, %c0_2] : memref<16x64xf32, #tpu.memory_space<vmem>>, vector<16x64xf32>
    %c0_3 = arith.constant 0 : index
    %c0_4 = arith.constant 0 : index
    %2 = vector.load %arg2[%c0_3, %c0_4] : memref<64x32xf32, #tpu.memory_space<vmem>>, vector<64x32xf32>
    %cst = arith.constant dense<0.000000e+00> : vector<16x32xf32>
    %3 = tpu.matmul %1, %2, %cst {dimension_numbers = #tpu.dot_dimension_numbers<[1], [0], [0], [1], [0, 0, 1, 1], [], []>} : vector<16x64xf32>, vector<64x32xf32>, vector<16x32xf32> -> vector<16x32xf32>
    %c0_5 = arith.constant 0 : index
    %c0_6 = arith.constant 0 : index
    %4 = vector.load %arg4[%c0_5, %c0_6] : memref<1x32xf32, #tpu.memory_space<vmem>>, vector<1x32xf32>
    %5 = vector.broadcast %4 : vector<1x32xf32> to vector<16x32xf32>
    %6 = arith.addf %3, %5 : vector<16x32xf32>
    %c0_7 = arith.constant 0 : index
    %c0_8 = arith.constant 0 : index
    %7 = vector.load %arg3[%c0_7, %c0_8] : memref<32x32xf32, #tpu.memory_space<vmem>>, vector<32x32xf32>
    %cst_9 = arith.constant dense<0.000000e+00> : vector<2x32xf32>
    %8 = tpu.matmul %0, %7, %cst_9 {dimension_numbers = #tpu.dot_dimension_numbers<[1], [0], [0], [1], [0, 0, 1, 1], [], []>} : vector<2x32xf32>, vector<32x32xf32>, vector<2x32xf32> -> vector<2x32xf32>
    %c0_10 = arith.constant 0 : index
    %c0_11 = arith.constant 0 : index
    %9 = vector.load %arg5[%c0_10, %c0_11] : memref<1x32xf32, #tpu.memory_space<vmem>>, vector<1x32xf32>
    %c0_12 = arith.constant 0 : index
    %c0_13 = arith.constant 0 : index
    %10 = vector.load %arg6[%c0_12, %c0_13] : memref<1x1xf32, #tpu.memory_space<vmem>>, vector<1x1xf32>
    %11 = vector.extract_strided_slice %6 {offsets = [0, 0], sizes = [8, 32], strides = [1, 1]} : vector<16x32xf32> to vector<8x32xf32>
    %12 = vector.extract_strided_slice %8 {offsets = [0, 0], sizes = [1, 32], strides = [1, 1]} : vector<2x32xf32> to vector<1x32xf32>
    %13 = vector.broadcast %12 : vector<1x32xf32> to vector<8x32xf32>
    %14 = arith.addf %11, %13 : vector<8x32xf32>
    %cst_14 = arith.constant 0.000000e+00 : f32
    %15 = vector.broadcast %cst_14 : f32 to vector<8x32xf32>
    %16 = arith.cmpf ogt, %14, %15 : vector<8x32xf32>
    %cst_15 = arith.constant 0.000000e+00 : f32
    %17 = vector.broadcast %cst_15 : f32 to vector<8x32xf32>
    %18 = arith.minimumf %14, %17 : vector<8x32xf32>
    %19 = math.exp %18 : vector<8x32xf32>
    %cst_16 = arith.constant 1.000000e+00 : f32
    %20 = vector.broadcast %cst_16 : f32 to vector<8x32xf32>
    %21 = arith.subf %19, %20 : vector<8x32xf32>
    %22 = arith.select %16, %14, %21 : vector<8x32xi1>, vector<8x32xf32>
    %23 = vector.broadcast %9 : vector<1x32xf32> to vector<8x32xf32>
    %24 = arith.mulf %22, %23 : vector<8x32xf32>
    %cst_17 = arith.constant dense<0.000000e+00> : vector<8xf32>
    %25 = vector.multi_reduction <add>, %24, %cst_17 [1] : vector<8x32xf32> to vector<8xf32>
    %26 = vector.shape_cast %25 : vector<8xf32> to vector<8x1xf32>
    %27 = vector.broadcast %10 : vector<1x1xf32> to vector<8x1xf32>
    %28 = arith.addf %26, %27 : vector<8x1xf32>
    %cst_18 = arith.constant dense<0xFF800000> : vector<1xf32>
    %29 = vector.multi_reduction <maximumf>, %28, %cst_18 [0] : vector<8x1xf32> to vector<1xf32>
    %30 = vector.shape_cast %29 : vector<1xf32> to vector<1x1xf32>
    %31 = vector.broadcast %30 : vector<1x1xf32> to vector<8x1xf32>
    %32 = arith.subf %28, %31 : vector<8x1xf32>
    %33 = math.exp %32 : vector<8x1xf32>
    %cst_19 = arith.constant dense<0.000000e+00> : vector<1xf32>
    %34 = vector.multi_reduction <add>, %33, %cst_19 [0] : vector<8x1xf32> to vector<1xf32>
    %35 = vector.shape_cast %34 : vector<1xf32> to vector<1x1xf32>
    %36 = tpu.reciprocal %35 {approx = true} : vector<1x1xf32> -> vector<1x1xf32>
    %37 = vector.broadcast %36 : vector<1x1xf32> to vector<8x1xf32>
    %38 = arith.mulf %33, %37 : vector<8x1xf32>
    %39 = vector.extract_strided_slice %1 {offsets = [0, 0], sizes = [8, 64], strides = [1, 1]} : vector<16x64xf32> to vector<8x64xf32>
    %40 = vector.broadcast %38 : vector<8x1xf32> to vector<8x64xf32>
    %41 = arith.mulf %40, %39 : vector<8x64xf32>
    %cst_20 = arith.constant dense<0.000000e+00> : vector<64xf32>
    %42 = vector.multi_reduction <add>, %41, %cst_20 [0] : vector<8x64xf32> to vector<64xf32>
    %43 = vector.shape_cast %42 : vector<64xf32> to vector<1x64xf32>
    %44 = vector.extract_strided_slice %6 {offsets = [8, 0], sizes = [8, 32], strides = [1, 1]} : vector<16x32xf32> to vector<8x32xf32>
    %45 = vector.extract_strided_slice %8 {offsets = [1, 0], sizes = [1, 32], strides = [1, 1]} : vector<2x32xf32> to vector<1x32xf32>
    %46 = vector.broadcast %45 : vector<1x32xf32> to vector<8x32xf32>
    %47 = arith.addf %44, %46 : vector<8x32xf32>
    %cst_21 = arith.constant 0.000000e+00 : f32
    %48 = vector.broadcast %cst_21 : f32 to vector<8x32xf32>
    %49 = arith.cmpf ogt, %47, %48 : vector<8x32xf32>
    %cst_22 = arith.constant 0.000000e+00 : f32
    %50 = vector.broadcast %cst_22 : f32 to vector<8x32xf32>
    %51 = arith.minimumf %47, %50 : vector<8x32xf32>
    %52 = math.exp %51 : vector<8x32xf32>
    %cst_23 = arith.constant 1.000000e+00 : f32
    %53 = vector.broadcast %cst_23 : f32 to vector<8x32xf32>
    %54 = arith.subf %52, %53 : vector<8x32xf32>
    %55 = arith.select %49, %47, %54 : vector<8x32xi1>, vector<8x32xf32>
    %56 = vector.broadcast %9 : vector<1x32xf32> to vector<8x32xf32>
    %57 = arith.mulf %55, %56 : vector<8x32xf32>
    %cst_24 = arith.constant dense<0.000000e+00> : vector<8xf32>
    %58 = vector.multi_reduction <add>, %57, %cst_24 [1] : vector<8x32xf32> to vector<8xf32>
    %59 = vector.shape_cast %58 : vector<8xf32> to vector<8x1xf32>
    %60 = vector.broadcast %10 : vector<1x1xf32> to vector<8x1xf32>
    %61 = arith.addf %59, %60 : vector<8x1xf32>
    %cst_25 = arith.constant dense<0xFF800000> : vector<1xf32>
    %62 = vector.multi_reduction <maximumf>, %61, %cst_25 [0] : vector<8x1xf32> to vector<1xf32>
    %63 = vector.shape_cast %62 : vector<1xf32> to vector<1x1xf32>
    %64 = vector.broadcast %63 : vector<1x1xf32> to vector<8x1xf32>
    %65 = arith.subf %61, %64 : vector<8x1xf32>
    %66 = math.exp %65 : vector<8x1xf32>
    %cst_26 = arith.constant dense<0.000000e+00> : vector<1xf32>
    %67 = vector.multi_reduction <add>, %66, %cst_26 [0] : vector<8x1xf32> to vector<1xf32>
    %68 = vector.shape_cast %67 : vector<1xf32> to vector<1x1xf32>
    %69 = tpu.reciprocal %68 {approx = true} : vector<1x1xf32> -> vector<1x1xf32>
    %70 = vector.broadcast %69 : vector<1x1xf32> to vector<8x1xf32>
    %71 = arith.mulf %66, %70 : vector<8x1xf32>
    %72 = vector.extract_strided_slice %1 {offsets = [8, 0], sizes = [8, 64], strides = [1, 1]} : vector<16x64xf32> to vector<8x64xf32>
    %73 = vector.broadcast %71 : vector<8x1xf32> to vector<8x64xf32>
    %74 = arith.mulf %73, %72 : vector<8x64xf32>
    %cst_27 = arith.constant dense<0.000000e+00> : vector<64xf32>
    %75 = vector.multi_reduction <add>, %74, %cst_27 [0] : vector<8x64xf32> to vector<64xf32>
    %76 = vector.shape_cast %75 : vector<64xf32> to vector<1x64xf32>
    %77 = tpu.concatenate %43, %76 in 0 : vector<1x64xf32>, vector<1x64xf32> -> vector<2x64xf32>
    %c0_28 = arith.constant 0 : index
    %c0_29 = arith.constant 0 : index
    %78 = vector.load %arg7[%c0_28, %c0_29] : memref<32x32xf32, #tpu.memory_space<vmem>>, vector<32x32xf32>
    %cst_30 = arith.constant dense<0.000000e+00> : vector<2x32xf32>
    %79 = tpu.matmul %0, %78, %cst_30 {dimension_numbers = #tpu.dot_dimension_numbers<[1], [0], [0], [1], [0, 0, 1, 1], [], []>} : vector<2x32xf32>, vector<32x32xf32>, vector<2x32xf32> -> vector<2x32xf32>
    %c0_31 = arith.constant 0 : index
    %c0_32 = arith.constant 0 : index
    %80 = vector.load %arg8[%c0_31, %c0_32] : memref<1x32xf32, #tpu.memory_space<vmem>>, vector<1x32xf32>
    %81 = vector.broadcast %80 : vector<1x32xf32> to vector<2x32xf32>
    %82 = arith.addf %79, %81 : vector<2x32xf32>
    %c0_33 = arith.constant 0 : index
    %c0_34 = arith.constant 0 : index
    %83 = vector.load %arg9[%c0_33, %c0_34] : memref<64x32xf32, #tpu.memory_space<vmem>>, vector<64x32xf32>
    %cst_35 = arith.constant dense<0.000000e+00> : vector<2x32xf32>
    %84 = tpu.matmul %77, %83, %cst_35 {dimension_numbers = #tpu.dot_dimension_numbers<[1], [0], [0], [1], [0, 0, 1, 1], [], []>} : vector<2x64xf32>, vector<64x32xf32>, vector<2x32xf32> -> vector<2x32xf32>
    %c0_36 = arith.constant 0 : index
    %c0_37 = arith.constant 0 : index
    %85 = vector.load %arg10[%c0_36, %c0_37] : memref<1x32xf32, #tpu.memory_space<vmem>>, vector<1x32xf32>
    %86 = vector.broadcast %85 : vector<1x32xf32> to vector<2x32xf32>
    %87 = arith.addf %84, %86 : vector<2x32xf32>
    %cst_38 = arith.constant 0.000000e+00 : f32
    %88 = vector.broadcast %cst_38 : f32 to vector<2x32xf32>
    %89 = arith.cmpf ogt, %82, %88 : vector<2x32xf32>
    %cst_39 = arith.constant 0.000000e+00 : f32
    %90 = vector.broadcast %cst_39 : f32 to vector<2x32xf32>
    %91 = arith.minimumf %82, %90 : vector<2x32xf32>
    %92 = math.exp %91 : vector<2x32xf32>
    %cst_40 = arith.constant 1.000000e+00 : f32
    %93 = vector.broadcast %cst_40 : f32 to vector<2x32xf32>
    %94 = arith.subf %92, %93 : vector<2x32xf32>
    %95 = arith.select %89, %82, %94 : vector<2x32xi1>, vector<2x32xf32>
    %cst_41 = arith.constant 0.000000e+00 : f32
    %96 = vector.broadcast %cst_41 : f32 to vector<2x32xf32>
    %97 = arith.cmpf ogt, %87, %96 : vector<2x32xf32>
    %cst_42 = arith.constant 0.000000e+00 : f32
    %98 = vector.broadcast %cst_42 : f32 to vector<2x32xf32>
    %99 = arith.minimumf %87, %98 : vector<2x32xf32>
    %100 = math.exp %99 : vector<2x32xf32>
    %cst_43 = arith.constant 1.000000e+00 : f32
    %101 = vector.broadcast %cst_43 : f32 to vector<2x32xf32>
    %102 = arith.subf %100, %101 : vector<2x32xf32>
    %103 = arith.select %97, %87, %102 : vector<2x32xi1>, vector<2x32xf32>
    %104 = arith.mulf %95, %103 : vector<2x32xf32>
    %c0_44 = arith.constant 0 : index
    %c0_45 = arith.constant 0 : index
    %105 = vector.load %arg11[%c0_44, %c0_45] : memref<2x32xf32, #tpu.memory_space<vmem>>, vector<2x32xf32>
    tpu.vector_store %arg11[%c0_44, %c0_45], %104 {strides = array<i32>} : memref<2x32xf32, #tpu.memory_space<vmem>>, vector<2x32xf32>,
    return
  }
}

</mosaic_0001>

<llo_original>
// kernel: tpu_custom_call.1
$region0: #{tpu_custom_call.1}
  #allocation0 [shape = 'u32[]', space=smem, size = 0x4, offset = 0x4, fixed_abs, tag = 'smem constant byte address 0x4 - core index']
  #allocation1 [shape = 'u32[144,128]{1,0:T(1,128)}', space=vmem, size = 0x12000, scoped, tag = 'internal scratch']
  #allocation2 [shape = 'f32[1,1]{1,0:T(1,128)S(1)}', space=vmem, size = 0x200, scoped, tag = 'scoped memory for tpu_custom_call.1']
  %s0 = inlined_call_operand.vmem [shape: f32[2,32], index: 0, kind: input, shape index: {}]
  %s1 = inlined_call_operand.vmem [shape: f32[16,64], index: 1, kind: input, shape index: {}]
  %s2 = inlined_call_operand.vmem [shape: f32[64,32], index: 2, kind: input, shape index: {}]
  %s3 = inlined_call_operand.vmem [shape: f32[32,32], index: 3, kind: input, shape index: {}]
  %s4 = inlined_call_operand.vmem [shape: f32[1,32], index: 4, kind: input, shape index: {}]
  %s5 = inlined_call_operand.vmem [shape: f32[1,32], index: 5, kind: input, shape index: {}]
  %s6 = inlined_call_operand.<no memory space> [shape: f32[1,1], index: 6, kind: input, shape index: {}]
  %s7 = inlined_call_operand.vmem [shape: f32[32,32], index: 7, kind: input, shape index: {}]
  %s8 = inlined_call_operand.vmem [shape: f32[1,32], index: 8, kind: input, shape index: {}]
  %s9 = inlined_call_operand.vmem [shape: f32[64,32], index: 9, kind: input, shape index: {}]
  %s10 = inlined_call_operand.vmem [shape: f32[1,32], index: 10, kind: input, shape index: {}]
  %s11 = inlined_call_operand.hbm [shape: f32[2,32], index: 11, kind: output, shape index: {}]
  %s12 = sld [smem:[#allocation0]]
  $region54: #{tpu_custom_call.1} parent=0
    _
  %s14 = ssub.s32 1, %s12
  %s15 = scalar_select 0, %s14, %s12
  %v16 = vstv %s6
  %17 = vst [vmem:[#allocation2] sm:$0x1] %v16
  $region1: #{tpu_custom_call.1} parent=0
    #allocation3 [shape = 'u8[1024]{0}', space=vmem, size = 0x400, scoped, tag = 'output window, operand 0, single buffered']
    #allocation4 [shape = 's32[1]{0}', space=sflag, size = 0x4, scoped, tag = 'scoped memory for tpu_custom_call.1']
    %18 = vsyncpa [#allocation4], 0
    // Predicated region
    $region2: #{tpu_custom_call.1} parent=1 // pred_check
      _
    $region3: #{tpu_custom_call.1} parent=1 // pred_check_branch
      %20 = sbr.rel (0) target = $region5
    $region4: #{tpu_custom_call.1} parent=1 // pred_region
      _
    $region5: #{tpu_custom_call.1} parent=1 // pred_fallthru
      _
    // Predicated region
    $region6: #{tpu_custom_call.1} parent=1 // pred_check
      _
    $region7: #{tpu_custom_call.1} parent=1 // pred_check_branch
      %22 = sbr.rel (0) target = $region9
    $region8: #{tpu_custom_call.1} parent=1 // pred_region
      _
    $region9: #{tpu_custom_call.1} parent=1 // pred_fallthru
      _
    // Predicated region
    $region10: #{tpu_custom_call.1} parent=1 // pred_check
      _
    $region11: #{tpu_custom_call.1} parent=1 // pred_check_branch
      %24 = sbr.rel (0) target = $region13
    $region12: #{tpu_custom_call.1} parent=1 // pred_region
      _
    $region13: #{tpu_custom_call.1} parent=1 // pred_fallthru
      _
    // Predicated region
    $region14: #{tpu_custom_call.1} parent=1 // pred_check
      _
    $region15: #{tpu_custom_call.1} parent=1 // pred_check_branch
      %26 = sbr.rel (0) target = $region17
    $region16: #{tpu_custom_call.1} parent=1 // pred_region
      _
    $region17: #{tpu_custom_call.1} parent=1 // pred_fallthru
      _
    // Predicated region
    $region18: #{tpu_custom_call.1} parent=1 // pred_check
      _
    $region19: #{tpu_custom_call.1} parent=1 // pred_check_branch
      %28 = sbr.rel (0) target = $region21
    $region20: #{tpu_custom_call.1} parent=1 // pred_region
      _
    $region21: #{tpu_custom_call.1} parent=1 // pred_fallthru
      _
    // Predicated region
    $region22: #{tpu_custom_call.1} parent=1 // pred_check
      _
    $region23: #{tpu_custom_call.1} parent=1 // pred_check_branch
      %30 = sbr.rel (0) target = $region25
    $region24: #{tpu_custom_call.1} parent=1 // pred_region
      _
    $region25: #{tpu_custom_call.1} parent=1 // pred_fallthru
      _
    // Predicated region
    $region26: #{tpu_custom_call.1} parent=1 // pred_check
      _
    $region27: #{tpu_custom_call.1} parent=1 // pred_check_branch
      %32 = sbr.rel (0) target = $region29
    $region28: #{tpu_custom_call.1} parent=1 // pred_region
      _
    $region29: #{tpu_custom_call.1} parent=1 // pred_fallthru
      _
    // Predicated region
    $region30: #{tpu_custom_call.1} parent=1 // pred_check
      _
    $region31: #{tpu_custom_call.1} parent=1 // pred_check_branch
      %34 = sbr.rel (0) target = $region33
    $region32: #{tpu_custom_call.1} parent=1 // pred_region
      _
    $region33: #{tpu_custom_call.1} parent=1 // pred_fallthru
      _
    // Predicated region
    $region34: #{tpu_custom_call.1} parent=1 // pred_check
      _
    $region35: #{tpu_custom_call.1} parent=1 // pred_check_branch
      %36 = sbr.rel (0) target = $region37
    $region36: #{tpu_custom_call.1} parent=1 // pred_region
      _
    $region37: #{tpu_custom_call.1} parent=1 // pred_fallthru
      _
    // Predicated region
    $region38: #{tpu_custom_call.1} parent=1 // pred_check
      _
    $region39: #{tpu_custom_call.1} parent=1 // pred_check_branch
      %38 = sbr.rel (0) target = $region41
    $region40: #{tpu_custom_call.1} parent=1 // pred_region
      _
    $region41: #{tpu_custom_call.1} parent=1 // pred_fallthru
      _
    // Predicated region
    $region42: #{tpu_custom_call.1} parent=1 // pred_check
      _
    $region43: #{tpu_custom_call.1} parent=1 // pred_check_branch
      %40 = sbr.rel (0) target = $region45
    $region44: #{tpu_custom_call.1} parent=1 // pred_region
      _
    $region45: #{tpu_custom_call.1} parent=1 // pred_fallthru
      _
    %v41 = vld [vmem:[%s0] sm:$0x3]
    %v42 = vld [vmem:[%s1] sm:$0xff]
    %v43 = vld [vmem:[%s1 + $0x8] sm:$0xff]
    %v44 = vld [vmem:[%s2] sm:$0xff]
    %v45 = vld [vmem:[%s2 + $0x8] sm:$0xff]
    %v46 = vld [vmem:[%s2 + $0x10] sm:$0xff]
    %v47 = vld [vmem:[%s2 + $0x18] sm:$0xff]
    %v48 = vld [vmem:[%s2 + $0x20] sm:$0xff]
    %v49 = vld [vmem:[%s2 + $0x28] sm:$0xff]
    %v50 = vld [vmem:[%s2 + $0x30] sm:$0xff]
    %v51 = vld [vmem:[%s2 + $0x38] sm:$0xff]
    %v52 = vld [vmem:[%s4] sm:$0x1]
    %v54 = vlaneseq
    %v55 = vshrl.u32 %v54, 7
    %v56 = vsub.s32 0, %v55
    %v57 = vrot.slane %v52, %v56
    %vm59 = vcmask 523264
    %v61 = vsel %vm59, %v42, 0
    %v64 = vsel %vm59, %v43, 0
    %66 = vmatprep.subr.mxu0 0.0
    %67 = vmatpush1.msra.mxu0 %v44
    %68 = vmatprep.subr.mxu0 0.0
    %69 = vmatpush1.msra.mxu0 %v45
    %70 = vmatprep.subr.mxu0 0.0
    %71 = vmatpush1.msra.mxu0 %v46
    %72 = vmatprep.subr.mxu0 0.0
    %73 = vmatpush1.msra.mxu0 %v47
    %74 = vmatprep.subr.mxu0 0.0
    %75 = vmatpush1.msra.mxu0 %v48
    %76 = vmatprep.subr.mxu0 0.0
    %77 = vmatpush1.msra.mxu0 %v49
    %78 = vmatprep.subr.mxu0 0.0
    %79 = vmatpush1.msra.mxu0 %v50
    %80 = vmatprep.subr.mxu0 0.0
    %81 = vmatpush1.msra.mxu0 %v51
    %82 = vmatprep.subr.mxu0 0.0
    %83 = vmatpush1.msra.mxu0 0.0
    %84 = vmatprep.subr.mxu0 0.0
    %85 = vmatpush1.msra.mxu0 0.0
    %86 = vmatprep.subr.mxu0 0.0
    %87 = vmatpush1.msra.mxu0 0.0
    %88 = vmatprep.subr.mxu0 0.0
    %89 = vmatpush1.msra.mxu0 0.0
    %90 = vmatprep.subr.mxu0 0.0
    %91 = vmatpush1.msra.mxu0 0.0
    %92 = vmatprep.subr.mxu0 0.0
    %93 = vmatpush1.msra.mxu0 0.0
    %94 = vmatprep.subr.mxu0 0.0
    %95 = vmatpush1.msra.mxu0 0.0
    %96 = vmatprep.subr.mxu0 0.0
    %97 = vmatpush1.msra.mxu0 0.0
    %98 = vmatprep.subr.mxu0 0.0
    %99 = vmatpush1.msra.mxu0 0.0
    %100 = vmatprep.subr.mxu0 0.0
    %101 = vmatpush1.msra.mxu0 0.0
    %102 = vmatprep.subr.mxu0 0.0
    %103 = vmatpush1.msra.mxu0 0.0
    %104 = vmatprep.subr.mxu0 0.0
    %105 = vmatpush1.msra.mxu0 0.0
    %106 = vmatprep.subr.mxu0 0.0
    %107 = vmatpush1.msra.mxu0 0.0
    %108 = vmatprep.subr.mxu0 0.0
    %109 = vmatpush1.msra.mxu0 0.0
    %110 = vmatprep.subr.mxu0 0.0
    %111 = vmatpush1.msra.mxu0 0.0
    %112 = vmatprep.subr.mxu0 0.0
    %113 = vmatpush1.msra.mxu0 0.0
    %114 = vmatprep.subr.mxu0 0.0
    %115 = vmatpush1.msra.mxu0 0.0
    %116 = vmatprep.subr.mxu0 0.0
    %117 = vmatpush1.msra.mxu0 0.0
    %118 = vmatprep.subr.mxu0 0.0
    %119 = vmatpush1.msra.mxu0 0.0
    %120 = vmatprep.subr.mxu0 0.0
    %121 = vmatpush1.msra.mxu0 0.0
    %122 = vmatprep.subr.mxu0 0.0
    %123 = vmatpush1.msra.mxu0 0.0
    %124 = vmatprep.subr.mxu0 0.0
    %125 = vmatpush1.msra.mxu0 0.0
    %126 = vmatprep.subr.mxu0 0.0
    %127 = vmatpush1.msra.mxu0 0.0
    %128 = vmatprep.subr.mxu0 0.0
    %129 = vmatpush1.msra.mxu0 0.0
    %130 = vmatprep.mubr.f32.mxu0 0.0
    %131 = vmatmul.mubr.f32.gmra.mrb[0].mxu0 %v61
    %v132 = vpop.f32.mrb[0].mxu0
    %v133 = vadd.f32 %v57, %v132
    %v134 = vpop.f32.mrb[0].mxu0
    %135 = vmatprep.mubr.f32.mxu0 0.0
    %136 = vmatmul.mubr.f32.gmra.mrb[0].mxu0 %v64
    %v137 = vpop.f32.mrb[0].mxu0
    %v138 = vadd.f32 %v57, %v137
    %v139 = vpop.f32.mrb[0].mxu0
    %140 = vdwg.mxu0
    %v141 = vld [vmem:[%s3] sm:$0xff]
    %v142 = vld [vmem:[%s3 + $0x8] sm:$0xff]
    %v143 = vld [vmem:[%s3 + $0x10] sm:$0xff]
    %v144 = vld [vmem:[%s3 + $0x18] sm:$0xff]
    %vm145 = vcmask 261120
    %v147 = vsel %vm145, %v41, 0
    %149 = vmatprep.subr.mxu0 0.0
    %150 = vmatpush1.msra.mxu0 %v141
    %151 = vmatprep.subr.mxu0 0.0
    %152 = vmatpush1.msra.mxu0 %v142
    %153 = vmatprep.subr.mxu0 0.0
    %154 = vmatpush1.msra.mxu0 %v143
    %155 = vmatprep.subr.mxu0 0.0
    %156 = vmatpush1.msra.mxu0 %v144
    %157 = vmatprep.subr.mxu0 0.0
    %158 = vmatpush1.msra.mxu0 0.0
    %159 = vmatprep.subr.mxu0 0.0
    %160 = vmatpush1.msra.mxu0 0.0
    %161 = vmatprep.subr.mxu0 0.0
    %162 = vmatpush1.msra.mxu0 0.0
    %163 = vmatprep.subr.mxu0 0.0
    %164 = vmatpush1.msra.mxu0 0.0
    %165 = vmatprep.subr.mxu0 0.0
    %166 = vmatpush1.msra.mxu0 0.0
    %167 = vmatprep.subr.mxu0 0.0
    %168 = vmatpush1.msra.mxu0 0.0
    %169 = vmatprep.subr.mxu0 0.0
    %170 = vmatpush1.msra.mxu0 0.0
    %171 = vmatprep.subr.mxu0 0.0
    %172 = vmatpush1.msra.mxu0 0.0
    %173 = vmatprep.subr.mxu0 0.0
    %174 = vmatpush1.msra.mxu0 0.0
    %175 = vmatprep.subr.mxu0 0.0
    %176 = vmatpush1.msra.mxu0 0.0
    %177 = vmatprep.subr.mxu0 0.0
    %178 = vmatpush1.msra.mxu0 0.0
    %179 = vmatprep.subr.mxu0 0.0
    %180 = vmatpush1.msra.mxu0 0.0
    %181 = vmatprep.subr.mxu0 0.0
    %182 = vmatpush1.msra.mxu0 0.0
    %183 = vmatprep.subr.mxu0 0.0
    %184 = vmatpush1.msra.mxu0 0.0
    %185 = vmatprep.subr.mxu0 0.0
    %186 = vmatpush1.msra.mxu0 0.0
    %187 = vmatprep.subr.mxu0 0.0
    %188 = vmatpush1.msra.mxu0 0.0
    %189 = vmatprep.subr.mxu0 0.0
    %190 = vmatpush1.msra.mxu0 0.0
    %191 = vmatprep.subr.mxu0 0.0
    %192 = vmatpush1.msra.mxu0 0.0
    %193 = vmatprep.subr.mxu0 0.0
    %194 = vmatpush1.msra.mxu0 0.0
    %195 = vmatprep.subr.mxu0 0.0
    %196 = vmatpush1.msra.mxu0 0.0
    %197 = vmatprep.subr.mxu0 0.0
    %198 = vmatpush1.msra.mxu0 0.0
    %199 = vmatprep.subr.mxu0 0.0
    %200 = vmatpush1.msra.mxu0 0.0
    %201 = vmatprep.subr.mxu0 0.0
    %202 = vmatpush1.msra.mxu0 0.0
    %203 = vmatprep.subr.mxu0 0.0
    %204 = vmatpush1.msra.mxu0 0.0
    %205 = vmatprep.subr.mxu0 0.0
    %206 = vmatpush1.msra.mxu0 0.0
    %207 = vmatprep.subr.mxu0 0.0
    %208 = vmatpush1.msra.mxu0 0.0
    %209 = vmatprep.subr.mxu0 0.0
    %210 = vmatpush1.msra.mxu0 0.0
    %211 = vmatprep.subr.mxu0 0.0
    %212 = vmatpush1.msra.mxu0 0.0
    %213 = vmatprep.mubr.f32.mxu0 0.0
    %214 = vmatmul.mubr.f32.gmra.mrb[0].mxu0 %v147
    %v215 = vpop.f32.mrb[0].mxu0
    %v216 = vadd.f32 0.0, %v215
    %v217 = vpop.f32.mrb[0].mxu0
    %218 = vdwg.mxu0
    %v219 = vld [vmem:[%s5] sm:$0x1]
    %v220 = vld [vmem:[#allocation2] sm:$0x1]
    %v221 = vlaneseq
    %v222 = vshrl.u32 %v221, 7
    %v223 = vsub.s32 0, %v222
    %v224 = vrot.slane %v216, %v223
    %v225 = vadd.f32 %v133, %v224
    %vm226 = vcmp.gt.f32.partialorder %v225, 0.0
    %v227 = vmin.f32 %v225, 0.0
    %v228 = vmul.f32 %v227, 1.442695
    %v229 = vpow.pop %v228
    %v230 = vsub.f32 %v229, 1.0
    %v231 = vsel %vm226, %v225, %v230
    %v233 = vlaneseq
    %v234 = vshrl.u32 %v233, 7
    %v235 = vsub.s32 0, %v234
    %v236 = vrot.slane %v219, %v235
    %v238 = vmul.f32 %v231, %v236
    %v239 = vsel %vm145, %v238, 0.0
    %240 = vadd.xlane.f32.xlu0 %v239
    %v241 = vpop.xlane.xlu0 %240
    %v243 = vlaneseq
    %v244 = vshrl.u32 %v243, 7
    %v245 = vsub.s32 0, %v244
    %v246 = vrot.slane %v220, %v245
    %v248 = vadd.f32 %v241, %v246
    %vm249 = vcmask 7168
    %v250 = vsel %vm249, %v248, -inf
    %v251 = vrot.slane %v250, 4
    %v252 = vmax.f32 %v250, %v251
    %v253 = vrot.slane %v252, 2
    %v254 = vmax.f32 %v252, %v253
    %v255 = vrot.slane %v254, 1
    %v256 = vmax.f32 %v254, %v255
    %v257 = vsub.f32 %v248, %v256
    %v258 = vmul.f32 %v257, 1.442695
    %v259 = vpow.pop %v258
    %v260 = vsel %vm249, %v259, 0.0
    %v261 = vrot.slane %v260, 4
    %v262 = vadd.f32 %v260, %v261
    %v263 = vrot.slane %v262, 2
    %v264 = vadd.f32 %v262, %v263
    %v265 = vrot.slane %v264, 1
    %v266 = vadd.f32 %v264, %v265
    %v267 = vrcp.pop %v266
    %v268 = vmul.f32 %v259, %v267
    %270 = vset.pattern.permute.xlu0 0
    %271 = vperm.xlu0 %270, %v268
    %v272 = vpop.permute.xlu0 %271
    %v274 = vmul.f32 %v272, %v42
    %v275 = vsel %vm59, %v274, 0.0
    %v276 = vrot.slane %v275, 4
    %v277 = vadd.f32 %v275, %v276
    %v278 = vrot.slane %v277, 2
    %v279 = vadd.f32 %v277, %v278
    %v280 = vrot.slane %v279, 1
    %v281 = vadd.f32 %v279, %v280
    %v282 = vlaneseq
    %v283 = vshrl.u32 %v282, 7
    %v284 = vsub.s32 1, %v283
    %v285 = vrot.slane %v216, %v284
    %v286 = vadd.f32 %v138, %v285
    %vm287 = vcmp.gt.f32.partialorder %v286, 0.0
    %v288 = vmin.f32 %v286, 0.0
    %v289 = vmul.f32 %v288, 1.442695
    %v290 = vpow.pop %v289
    %v291 = vsub.f32 %v290, 1.0
    %v292 = vsel %vm287, %v286, %v291
    %v293 = vmul.f32 %v292, %v236
    %v294 = vsel %vm145, %v293, 0.0
    %295 = vadd.xlane.f32.xlu0 %v294
    %v296 = vpop.xlane.xlu0 %295
    %v297 = vadd.f32 %v296, %v246
    %v298 = vsel %vm249, %v297, -inf
    %v299 = vrot.slane %v298, 4
    %v300 = vmax.f32 %v298, %v299
    %v301 = vrot.slane %v300, 2
    %v302 = vmax.f32 %v300, %v301
    %v303 = vrot.slane %v302, 1
    %v304 = vmax.f32 %v302, %v303
    %v305 = vsub.f32 %v297, %v304
    %v306 = vmul.f32 %v305, 1.442695
    %v307 = vpow.pop %v306
    %v308 = vsel %vm249, %v307, 0.0
    %v309 = vrot.slane %v308, 4
    %v310 = vadd.f32 %v308, %v309
    %v311 = vrot.slane %v310, 2
    %v312 = vadd.f32 %v310, %v311
    %v313 = vrot.slane %v312, 1
    %v314 = vadd.f32 %v312, %v313
    %v315 = vrcp.pop %v314
    %v316 = vmul.f32 %v307, %v315
    %318 = vset.pattern.permute.xlu0 0
    %319 = vperm.xlu0 %318, %v316
    %v320 = vpop.permute.xlu0 %319
    %v322 = vmul.f32 %v320, %v43
    %v323 = vsel %vm59, %v322, 0.0
    %v324 = vrot.slane %v323, 4
    %v325 = vadd.f32 %v323, %v324
    %v326 = vrot.slane %v325, 2
    %v327 = vadd.f32 %v325, %v326
    %v328 = vrot.slane %v327, 1
    %v329 = vadd.f32 %v327, %v328
    %vm330 = vcmask 1040384
    %v331 = vsel %vm330, %v281, %v329
    %v332 = vld [vmem:[%s7] sm:$0xff]
    %v333 = vld [vmem:[%s7 + $0x8] sm:$0xff]
    %v334 = vld [vmem:[%s7 + $0x10] sm:$0xff]
    %v335 = vld [vmem:[%s7 + $0x18] sm:$0xff]
    %v336 = vld [vmem:[%s8] sm:$0x1]
    %v338 = vlaneseq
    %v339 = vshrl.u32 %v338, 7
    %v340 = vsub.s32 0, %v339
    %v341 = vrot.slane %v336, %v340
    %343 = vmatprep.subr.mxu0 0.0
    %344 = vmatpush1.msra.mxu0 %v332
    %345 = vmatprep.subr.mxu0 0.0
    %346 = vmatpush1.msra.mxu0 %v333
    %347 = vmatprep.subr.mxu0 0.0
    %348 = vmatpush1.msra.mxu0 %v334
    %349 = vmatprep.subr.mxu0 0.0
    %350 = vmatpush1.msra.mxu0 %v335
    %351 = vmatprep.subr.mxu0 0.0
    %352 = vmatpush1.msra.mxu0 0.0
    %353 = vmatprep.subr.mxu0 0.0
    %354 = vmatpush1.msra.mxu0 0.0
    %355 = vmatprep.subr.mxu0 0.0
    %356 = vmatpush1.msra.mxu0 0.0
    %357 = vmatprep.subr.mxu0 0.0
    %358 = vmatpush1.msra.mxu0 0.0
    %359 = vmatprep.subr.mxu0 0.0
    %360 = vmatpush1.msra.mxu0 0.0
    %361 = vmatprep.subr.mxu0 0.0
    %362 = vmatpush1.msra.mxu0 0.0
    %363 = vmatprep.subr.mxu0 0.0
    %364 = vmatpush1.msra.mxu0 0.0
    %365 = vmatprep.subr.mxu0 0.0
    %366 = vmatpush1.msra.mxu0 0.0
    %367 = vmatprep.subr.mxu0 0.0
    %368 = vmatpush1.msra.mxu0 0.0
    %369 = vmatprep.subr.mxu0 0.0
    %370 = vmatpush1.msra.mxu0 0.0
    %371 = vmatprep.subr.mxu0 0.0
    %372 = vmatpush1.msra.mxu0 0.0
    %373 = vmatprep.subr.mxu0 0.0
    %374 = vmatpush1.msra.mxu0 0.0
    %375 = vmatprep.subr.mxu0 0.0
    %376 = vmatpush1.msra.mxu0 0.0
    %377 = vmatprep.subr.mxu0 0.0
    %378 = vmatpush1.msra.mxu0 0.0
    %379 = vmatprep.subr.mxu0 0.0
    %380 = vmatpush1.msra.mxu0 0.0
    %381 = vmatprep.subr.mxu0 0.0
    %382 = vmatpush1.msra.mxu0 0.0
    %383 = vmatprep.subr.mxu0 0.0
    %384 = vmatpush1.msra.mxu0 0.0
    %385 = vmatprep.subr.mxu0 0.0
    %386 = vmatpush1.msra.mxu0 0.0
    %387 = vmatprep.subr.mxu0 0.0
    %388 = vmatpush1.msra.mxu0 0.0
    %389 = vmatprep.subr.mxu0 0.0
    %390 = vmatpush1.msra.mxu0 0.0
    %391 = vmatprep.subr.mxu0 0.0
    %392 = vmatpush1.msra.mxu0 0.0
    %393 = vmatprep.subr.mxu0 0.0
    %394 = vmatpush1.msra.mxu0 0.0
    %395 = vmatprep.subr.mxu0 0.0
    %396 = vmatpush1.msra.mxu0 0.0
    %397 = vmatprep.subr.mxu0 0.0
    %398 = vmatpush1.msra.mxu0 0.0
    %399 = vmatprep.subr.mxu0 0.0
    %400 = vmatpush1.msra.mxu0 0.0
    %401 = vmatprep.subr.mxu0 0.0
    %402 = vmatpush1.msra.mxu0 0.0
    %403 = vmatprep.subr.mxu0 0.0
    %404 = vmatpush1.msra.mxu0 0.0
    %405 = vmatprep.subr.mxu0 0.0
    %406 = vmatpush1.msra.mxu0 0.0
    %407 = vmatprep.mubr.f32.mxu0 0.0
    %408 = vmatmul.mubr.f32.gmra.mrb[0].mxu0 %v147
    %v409 = vpop.f32.mrb[0].mxu0
    %v410 = vadd.f32 %v341, %v409
    %v411 = vpop.f32.mrb[0].mxu0
    %412 = vdwg.mxu0
    %v413 = vld [vmem:[%s9] sm:$0xff]
    %v414 = vld [vmem:[%s9 + $0x8] sm:$0xff]
    %v415 = vld [vmem:[%s9 + $0x10] sm:$0xff]
    %v416 = vld [vmem:[%s9 + $0x18] sm:$0xff]
    %v417 = vld [vmem:[%s9 + $0x20] sm:$0xff]
    %v418 = vld [vmem:[%s9 + $0x28] sm:$0xff]
    %v419 = vld [vmem:[%s9 + $0x30] sm:$0xff]
    %v420 = vld [vmem:[%s9 + $0x38] sm:$0xff]
    %v421 = vld [vmem:[%s10] sm:$0x1]
    %v423 = vlaneseq
    %v424 = vshrl.u32 %v423, 7
    %v425 = vsub.s32 0, %v424
    %v426 = vrot.slane %v421, %v425
    %v429 = vsel %vm59, %v331, 0
    %431 = vmatprep.subr.mxu0 0.0
    %432 = vmatpush1.msra.mxu0 %v413
    %433 = vmatprep.subr.mxu0 0.0
    %434 = vmatpush1.msra.mxu0 %v414
    %435 = vmatprep.subr.mxu0 0.0
    %436 = vmatpush1.msra.mxu0 %v415
    %437 = vmatprep.subr.mxu0 0.0
    %438 = vmatpush1.msra.mxu0 %v416
    %439 = vmatprep.subr.mxu0 0.0
    %440 = vmatpush1.msra.mxu0 %v417
    %441 = vmatprep.subr.mxu0 0.0
    %442 = vmatpush1.msra.mxu0 %v418
    %443 = vmatprep.subr.mxu0 0.0
    %444 = vmatpush1.msra.mxu0 %v419
    %445 = vmatprep.subr.mxu0 0.0
    %446 = vmatpush1.msra.mxu0 %v420
    %447 = vmatprep.subr.mxu0 0.0
    %448 = vmatpush1.msra.mxu0 0.0
    %449 = vmatprep.subr.mxu0 0.0
    %450 = vmatpush1.msra.mxu0 0.0
    %451 = vmatprep.subr.mxu0 0.0
    %452 = vmatpush1.msra.mxu0 0.0
    %453 = vmatprep.subr.mxu0 0.0
    %454 = vmatpush1.msra.mxu0 0.0
    %455 = vmatprep.subr.mxu0 0.0
    %456 = vmatpush1.msra.mxu0 0.0
    %457 = vmatprep.subr.mxu0 0.0
    %458 = vmatpush1.msra.mxu0 0.0
    %459 = vmatprep.subr.mxu0 0.0
    %460 = vmatpush1.msra.mxu0 0.0
    %461 = vmatprep.subr.mxu0 0.0
    %462 = vmatpush1.msra.mxu0 0.0
    %463 = vmatprep.subr.mxu0 0.0
    %464 = vmatpush1.msra.mxu0 0.0
    %465 = vmatprep.subr.mxu0 0.0
    %466 = vmatpush1.msra.mxu0 0.0
    %467 = vmatprep.subr.mxu0 0.0
    %468 = vmatpush1.msra.mxu0 0.0
    %469 = vmatprep.subr.mxu0 0.0
    %470 = vmatpush1.msra.mxu0 0.0
    %471 = vmatprep.subr.mxu0 0.0
    %472 = vmatpush1.msra.mxu0 0.0
    %473 = vmatprep.subr.mxu0 0.0
    %474 = vmatpush1.msra.mxu0 0.0
    %475 = vmatprep.subr.mxu0 0.0
    %476 = vmatpush1.msra.mxu0 0.0
    %477 = vmatprep.subr.mxu0 0.0
    %478 = vmatpush1.msra.mxu0 0.0
    %479 = vmatprep.subr.mxu0 0.0
    %480 = vmatpush1.msra.mxu0 0.0
    %481 = vmatprep.subr.mxu0 0.0
    %482 = vmatpush1.msra.mxu0 0.0
    %483 = vmatprep.subr.mxu0 0.0
    %484 = vmatpush1.msra.mxu0 0.0
    %485 = vmatprep.subr.mxu0 0.0
    %486 = vmatpush1.msra.mxu0 0.0
    %487 = vmatprep.subr.mxu0 0.0
    %488 = vmatpush1.msra.mxu0 0.0
    %489 = vmatprep.subr.mxu0 0.0
    %490 = vmatpush1.msra.mxu0 0.0
    %491 = vmatprep.subr.mxu0 0.0
    %492 = vmatpush1.msra.mxu0 0.0
    %493 = vmatprep.subr.mxu0 0.0
    %494 = vmatpush1.msra.mxu0 0.0
    %495 = vmatprep.mubr.f32.mxu0 0.0
    %496 = vmatmul.mubr.f32.gmra.mrb[0].mxu0 %v429
    %v497 = vpop.f32.mrb[0].mxu0
    %v498 = vadd.f32 %v426, %v497
    %v499 = vpop.f32.mrb[0].mxu0
    %500 = vdwg.mxu0
    %vm501 = vcmp.gt.f32.partialorder %v410, 0.0
    %v502 = vmin.f32 %v410, 0.0
    %v503 = vmul.f32 %v502, 1.442695
    %v504 = vpow.pop %v503
    %v505 = vsub.f32 %v504, 1.0
    %v506 = vsel %vm501, %v410, %v505
    %vm507 = vcmp.gt.f32.partialorder %v498, 0.0
    %v508 = vmin.f32 %v498, 0.0
    %v509 = vmul.f32 %v508, 1.442695
    %v510 = vpow.pop %v509
    %v511 = vsub.f32 %v510, 1.0
    %v512 = vsel %vm507, %v498, %v511
    %v513 = vmul.f32 %v506, %v512
    %vm514 = vcmask 254976
    %515 = vst.msk [vmem:[#allocation3] sm:$0x3] %vm514, %v513
    // Predicated region
    $region46: #{tpu_custom_call.1} parent=1 // pred_check
      _
    $region47: #{tpu_custom_call.1} parent=1 // pred_check_branch
      %517 = sbr.rel (0) target = $region49
    $region48: #{tpu_custom_call.1} parent=1 // pred_region
      %s519 = ssub.s32 32, 32
      %520 = vsyncadd [#allocation4], %s519
      %s522 = sshll.u32 [#allocation3], 4
      %s523 = int_to_ptr.vmem [resolvable:$true] %s522
      %525 = dma.vmem_to_hbm [thread:$0]  %s523, 32, %s11, [#allocation4]
    $region49: #{tpu_custom_call.1} parent=1 // pred_fallthru
      _
    // Predicated region
    $region50: #{tpu_custom_call.1} parent=1 // pred_check
      _
    $region51: #{tpu_custom_call.1} parent=1 // pred_check_branch
      %527 = sbr.rel (0) target = $region53
    $region52: #{tpu_custom_call.1} parent=1 // pred_region
      %528 = dma.done [#allocation4], 32
    $region53: #{tpu_custom_call.1} parent=1 // pred_fallthru
      _
    %529 = vsyncpa [#allocation4], 1

</llo_original>
